<compile_context>
chip_gen: v7x
topology: tpu7x:2x2x1
jax: 0.10.0
libtpu: 0.0.40
codegen_flags: <defaults>
</compile_context>

<pallas_src>
import jax
import jax.numpy as jnp
from jax import lax
from jax.experimental import pallas as pl
from jax.experimental.pallas import tpu as pltpu

_LANE = 128
_SUBLANE = 8


def _round_up(x, m):
    return -(-x // m) * m


def _pick_tile(dim, target):
    """dim is a lane-multiple. Largest lane-multiple tile <= target dividing dim."""
    if dim <= target:
        return dim
    if dim % target == 0:
        return target
    t = (target // _LANE) * _LANE
    while t > _LANE and dim % t:
        t -= _LANE
    return t if dim % t == 0 else _LANE


def _pick_tm(batch, tm_target):
    """Row tile: full target for big batches; otherwise split into >=2 sublane-aligned
    tiles so the v7x megacore gets work on the 'parallel' axis."""
    if batch >= 2 * tm_target:
        return tm_target
    if batch > _SUBLANE:
        return _round_up(-(-batch // 2), _SUBLANE)
    return _SUBLANE


# ---------------------------------------------------------------------------
# Fused kernel
# ---------------------------------------------------------------------------

def _geu_fused_kernel(x_ref, w1_ref, b1_ref, w2_ref, b2_ref, o_ref, h_ref):
    """Per row tile i: accumulate h = x @ W1t + b1 over the k grid axis into the
    f32 VMEM scratch h_ref; at the last k step run the ContextGating epilogue
    o = h * sigmoid(h @ W2t + b2) directly from the resident scratch."""
    k = pl.program_id(1)

    @pl.when(k == 0)
    def _():
        # Fold the first bias into the accumulator init.
        h_ref[...] = jnp.broadcast_to(b1_ref[...], h_ref.shape).astype(jnp.float32)

    # Standard (K, N) contraction; inputs cast to the weight dtype (bf16 when
    # enabled) with f32 accumulation on the MXU.
    h_ref[...] += lax.dot_general(
        x_ref[...].astype(w1_ref.dtype), w1_ref[...],
        dimension_numbers=(((1,), (0,)), ((), ())),
        preferred_element_type=jnp.float32)

    @pl.when(k == pl.num_programs(1) - 1)
    def _():
        h = h_ref[...]
        g = lax.dot_general(
            h.astype(w2_ref.dtype), w2_ref[...],
            dimension_numbers=(((1,), (0,)), ((), ())),
            preferred_element_type=jnp.float32) + b2_ref[...]
        o_ref[...] = (h * jax.nn.sigmoid(g)).astype(o_ref.dtype)   # EUP + VPU epilogue


# ---------------------------------------------------------------------------
# Model-load-time parameter prep (pad + transpose + optional bf16), and wrapper
# ---------------------------------------------------------------------------

def prepare_geu_params(w1, b1, w2, b2, *, weight_dtype=jnp.float32, lane=_LANE):
    """One-time zero-pad of feature dims to lane multiples and transpose of the
    PyTorch (out, in) weights to (K, N) contraction layout. Zero padding is exact."""
    out_dim, in_dim = w1.shape
    assert w2.shape == (out_dim, out_dim)
    kp = _round_up(in_dim, lane)
    np_ = _round_up(out_dim, lane)
    w1t = jnp.pad(w1, ((0, np_ - out_dim), (0, kp - in_dim))).T.astype(weight_dtype)
    w2t = jnp.pad(w2, ((0, np_ - out_dim), (0, np_ - out_dim))).T.astype(weight_dtype)
    return dict(
        w1t=w1t,                                                     # (Kp, Np)
        b1=jnp.pad(b1.astype(jnp.float32), (0, np_ - out_dim)),      # (Np,)
        w2t=w2t,                                                     # (Np, Np)
        b2=jnp.pad(b2.astype(jnp.float32), (0, np_ - out_dim)),      # (Np,)
        in_dim=in_dim, out_dim=out_dim)


def gated_embedding_unit(x, params, *, tm_target=256, tk_target=512,
                         vmem_limit_bytes=48 * 1024 * 1024):
    """y = ContextGating(Linear(x)) = h * sigmoid(h @ W2.T + b2), h = x @ W1.T + b1."""
    w1t, b1, w2t, b2 = params["w1t"], params["b1"], params["w2t"], params["b2"]
    Kp, Np = w1t.shape
    B0, K0 = x.shape
    assert K0 == params["in_dim"]

    tm = _pick_tm(B0, tm_target)
    n_i = -(-B0 // tm)
    Bp = n_i * tm
    tk = _pick_tile(Kp, tk_target)
    n_k = Kp // tk

    pad_b, pad_k = Bp - B0, Kp - K0
    if pad_b or pad_k:
        x = jnp.pad(x, ((0, pad_b), (0, pad_k)))

    b1_2d = b1.reshape(1, Np)
    b2_2d = b2.reshape(1, Np)

    wbytes = w1t.dtype.itemsize
    cost = pl.CostEstimate(
        flops=2 * Bp * Np * Kp + 2 * Bp * Np * Np,
        transcendentals=Bp * Np,
        bytes_accessed=int(x.size * x.dtype.itemsize
                           + (n_i if n_k > 1 else 1) * w1t.size * wbytes
                           + w2t.size * wbytes
                           + (b1_2d.size + b2_2d.size) * 4
                           + Bp * Np * x.dtype.itemsize))

    y = pl.pallas_call(
        _geu_fused_kernel,
        out_shape=jax.ShapeDtypeStruct((Bp, Np), x.dtype),
        grid_spec=pltpu.PrefetchScalarGridSpec(
            num_scalar_prefetch=0,
            grid=(n_i, n_k),
            in_specs=[
                pl.BlockSpec((tm, tk), lambda i, k: (i, k)),    # x tile
                pl.BlockSpec((tk, Np), lambda i, k: (k, 0)),    # W1t slab (resident if n_k==1)
                pl.BlockSpec((1, Np), lambda i, k: (0, 0)),     # b1 (resident)
                pl.BlockSpec((Np, Np), lambda i, k: (0, 0)),    # W2t (resident)
                pl.BlockSpec((1, Np), lambda i, k: (0, 0)),     # b2 (resident)
            ],
            out_specs=pl.BlockSpec((tm, Np), lambda i, k: (i, 0)),
            scratch_shapes=[pltpu.VMEM((tm, Np), jnp.float32)]),   # h accumulator
        compiler_params=pltpu.CompilerParams(
            dimension_semantics=("parallel", "arbitrary"),
            vmem_limit_bytes=vmem_limit_bytes),
        cost_estimate=cost,
    )(x, w1t, b1_2d, w2t, b2_2d)

    return y[:B0, :params["out_dim"]]


def gated_embedding_unit_ref(x, w1, b1, w2, b2):
    h = jnp.dot(x, w1.T, precision="highest") + b1
    return h * jax.nn.sigmoid(jnp.dot(h, w2.T, precision="highest") + b2)


if __name__ == "__main__":
    # Small, deliberately non-lane-aligned shapes so the test also exercises the
    # padding, the 2-row-tile "parallel" axis, and the k-accumulation path.
    B, IN_DIM, OUT_DIM = 20, 200, 160

    key = jax.random.PRNGKey(0)
    kx, kw1, kb1, kw2, kb2 = jax.random.split(key, 5)

    x = jax.random.normal(kx, (B, IN_DIM), dtype=jnp.float32)
    bound1 = 1.0 / (IN_DIM ** 0.5)
    w1 = jax.random.uniform(kw1, (OUT_DIM, IN_DIM), minval=-bound1, maxval=bound1,
                            dtype=jnp.float32)
    b1 = jax.random.uniform(kb1, (OUT_DIM,), minval=-bound1, maxval=bound1,
                            dtype=jnp.float32)
    bound2 = 1.0 / (OUT_DIM ** 0.5)
    w2 = jax.random.uniform(kw2, (OUT_DIM, OUT_DIM), minval=-bound2, maxval=bound2,
                            dtype=jnp.float32)
    b2 = jax.random.uniform(kb2, (OUT_DIM,), minval=-bound2, maxval=bound2,
                            dtype=jnp.float32)

    ref = gated_embedding_unit_ref(x, w1, b1, w2, b2)

    # f32 weights; small tk_target so the toy shapes run a (2, 2) grid with real
    # k-accumulation into the h scratch. Production shapes keep the defaults.
    params_f32 = prepare_geu_params(w1, b1, w2, b2)
    out = jax.block_until_ready(gated_embedding_unit(x, params_f32, tk_target=128))
    assert out.shape == (B, OUT_DIM)
    assert jnp.allclose(out, ref, atol=5e-3, rtol=5e-3), "f32 kernel mismatch vs reference"

    # bf16-stored weights (native MXU rate, halved weight traffic), f32 accumulation.
    params_bf16 = prepare_geu_params(w1, b1, w2, b2, weight_dtype=jnp.bfloat16)
    out_bf16 = jax.block_until_ready(gated_embedding_unit(x, params_bf16))
    assert out_bf16.shape == (B, OUT_DIM)
    assert jnp.allclose(out_bf16, ref, atol=5e-2, rtol=5e-2), "bf16 kernel mismatch vs reference"

    print("KERNEL_OK")
</pallas_src>

<mosaic_0001>
module attributes {stable_mosaic.version = 11 : i64} {
  func.func @_geu_fused_kernel(%arg0: i32, %arg1: i32, %arg2: memref<16x128xf32, #tpu.memory_space<vmem>>, %arg3: memref<128x256xf32, #tpu.memory_space<vmem>>, %arg4: memref<1x256xf32, #tpu.memory_space<vmem>>, %arg5: memref<256x256xf32, #tpu.memory_space<vmem>>, %arg6: memref<1x256xf32, #tpu.memory_space<vmem>>, %arg7: memref<16x256xf32, #tpu.memory_space<vmem>>, %arg8: memref<16x256xf32, #tpu.memory_space<vmem>>) attributes {dimension_semantics = [#tpu.dimension_semantics<parallel>, #tpu.dimension_semantics<arbitrary>], iteration_bounds = array<i64: 2, 2>, scalar_prefetch = 0 : i64, scratch_operands = 1 : i64, tpu.core_type = #tpu.core_type<tc>, window_params = [{transform_indices = @transform_0, window_bounds = array<i64: 16, 128>}, {transform_indices = @transform_1, window_bounds = array<i64: 128, 256>}, {pipeline_mode = #tpu.pipeline_mode<synchronous>, transform_indices = @transform_2, window_bounds = array<i64: 1, 256>}, {pipeline_mode = #tpu.pipeline_mode<synchronous>, transform_indices = @transform_3, window_bounds = array<i64: 256, 256>}, {pipeline_mode = #tpu.pipeline_mode<synchronous>, transform_indices = @transform_4, window_bounds = array<i64: 1, 256>}, {transform_indices = @transform_5, window_bounds = array<i64: 16, 256>}]} {
    %c0_i32 = arith.constant 0 : i32
    %0 = arith.cmpi eq, %arg1, %c0_i32 : i32
    %1 = arith.extui %0 : i1 to i32
    %c0_i32_0 = arith.constant 0 : i32
    %2 = arith.cmpi ne, %1, %c0_i32_0 : i32
    scf.if %2 {
      %c0_9 = arith.constant 0 : index
      %c0_10 = arith.constant 0 : index
      %12 = vector.load %arg4[%c0_9, %c0_10] : memref<1x256xf32, #tpu.memory_space<vmem>>, vector<1x256xf32>
      %13 = vector.shape_cast %12 : vector<1x256xf32> to vector<1x256xf32>
      %14 = vector.broadcast %13 : vector<1x256xf32> to vector<16x256xf32>
      %c0_11 = arith.constant 0 : index
      %c0_12 = arith.constant 0 : index
      %15 = vector.load %arg8[%c0_11, %c0_12] : memref<16x256xf32, #tpu.memory_space<vmem>>, vector<16x256xf32>
      tpu.vector_store %arg8[%c0_11, %c0_12], %14 {strides = array<i32>} : memref<16x256xf32, #tpu.memory_space<vmem>>, vector<16x256xf32>,
    } else {
    }
    %c0 = arith.constant 0 : index
    %c0_1 = arith.constant 0 : index
    %3 = vector.load %arg8[%c0, %c0_1] : memref<16x256xf32, #tpu.memory_space<vmem>>, vector<16x256xf32>
    %c0_2 = arith.constant 0 : index
    %c0_3 = arith.constant 0 : index
    %4 = vector.load %arg2[%c0_2, %c0_3] : memref<16x128xf32, #tpu.memory_space<vmem>>, vector<16x128xf32>
    %c0_4 = arith.constant 0 : index
    %c0_5 = arith.constant 0 : index
    %5 = vector.load %arg3[%c0_4, %c0_5] : memref<128x256xf32, #tpu.memory_space<vmem>>, vector<128x256xf32>
    %cst = arith.constant dense<0.000000e+00> : vector<16x256xf32>
    %6 = tpu.matmul %4, %5, %cst {dimension_numbers = #tpu.dot_dimension_numbers<[1], [0], [0], [1], [0, 0, 1, 1], [], []>} : vector<16x128xf32>, vector<128x256xf32>, vector<16x256xf32> -> vector<16x256xf32>
    %7 = arith.addf %3, %6 : vector<16x256xf32>
    %c0_6 = arith.constant 0 : index
    %c0_7 = arith.constant 0 : index
    %8 = vector.load %arg8[%c0_6, %c0_7] : memref<16x256xf32, #tpu.memory_space<vmem>>, vector<16x256xf32>
    tpu.vector_store %arg8[%c0_6, %c0_7], %7 {strides = array<i32>} : memref<16x256xf32, #tpu.memory_space<vmem>>, vector<16x256xf32>,
    %c1_i32 = arith.constant 1 : i32
    %9 = arith.cmpi eq, %arg1, %c1_i32 : i32
    %10 = arith.extui %9 : i1 to i32
    %c0_i32_8 = arith.constant 0 : i32
    %11 = arith.cmpi ne, %10, %c0_i32_8 : i32
    scf.if %11 {
      %c0_9 = arith.constant 0 : index
      %c0_10 = arith.constant 0 : index
      %12 = vector.load %arg8[%c0_9, %c0_10] : memref<16x256xf32, #tpu.memory_space<vmem>>, vector<16x256xf32>
      %c0_11 = arith.constant 0 : index
      %c0_12 = arith.constant 0 : index
      %13 = vector.load %arg5[%c0_11, %c0_12] : memref<256x256xf32, #tpu.memory_space<vmem>>, vector<256x256xf32>
      %cst_13 = arith.constant dense<0.000000e+00> : vector<16x256xf32>
      %14 = tpu.matmul %12, %13, %cst_13 {dimension_numbers = #tpu.dot_dimension_numbers<[1], [0], [0], [1], [0, 0, 1, 1], [], []>} : vector<16x256xf32>, vector<256x256xf32>, vector<16x256xf32> -> vector<16x256xf32>
      %c0_14 = arith.constant 0 : index
      %c0_15 = arith.constant 0 : index
      %15 = vector.load %arg6[%c0_14, %c0_15] : memref<1x256xf32, #tpu.memory_space<vmem>>, vector<1x256xf32>
      %16 = vector.broadcast %15 : vector<1x256xf32> to vector<16x256xf32>
      %17 = arith.addf %14, %16 : vector<16x256xf32>
      %18 = arith.negf %17 : vector<16x256xf32>
      %19 = math.exp %18 : vector<16x256xf32>
      %cst_16 = arith.constant 1.000000e+00 : f32
      %20 = vector.broadcast %cst_16 : f32 to vector<16x256xf32>
      %21 = arith.addf %20, %19 : vector<16x256xf32>
      %22 = arith.divf %20, %21 : vector<16x256xf32>
      %23 = arith.mulf %12, %22 : vector<16x256xf32>
      %c0_17 = arith.constant 0 : index
      %c0_18 = arith.constant 0 : index
      %24 = vector.load %arg7[%c0_17, %c0_18] : memref<16x256xf32, #tpu.memory_space<vmem>>, vector<16x256xf32>
      tpu.vector_store %arg7[%c0_17, %c0_18], %23 {strides = array<i32>} : memref<16x256xf32, #tpu.memory_space<vmem>>, vector<16x256xf32>,
    } else {
    }
    return
  }
  func.func @transform_0(%arg0: i32, %arg1: i32) -> (i32, i32) {
    %c0_i32 = arith.constant 0 : i32
    return %arg0, %arg1 : i32, i32
  }
  func.func @transform_1(%arg0: i32, %arg1: i32) -> (i32, i32) {
    %c0_i32 = arith.constant 0 : i32
    %c0_i32_0 = arith.constant 0 : i32
    return %arg1, %c0_i32 : i32, i32
  }
  func.func @transform_2(%arg0: i32, %arg1: i32) -> (i32, i32) {
    %c0_i32 = arith.constant 0 : i32
    %c0_i32_0 = arith.constant 0 : i32
    %c0_i32_1 = arith.constant 0 : i32
    return %c0_i32, %c0_i32_0 : i32, i32
  }
  func.func @transform_3(%arg0: i32, %arg1: i32) -> (i32, i32) {
    %c0_i32 = arith.constant 0 : i32
    %c0_i32_0 = arith.constant 0 : i32
    %c0_i32_1 = arith.constant 0 : i32
    return %c0_i32, %c0_i32_0 : i32, i32
  }
  func.func @transform_4(%arg0: i32, %arg1: i32) -> (i32, i32) {
    %c0_i32 = arith.constant 0 : i32
    %c0_i32_0 = arith.constant 0 : i32
    %c0_i32_1 = arith.constant 0 : i32
    return %c0_i32, %c0_i32_0 : i32, i32
  }
  func.func @transform_5(%arg0: i32, %arg1: i32) -> (i32, i32) {
    %c0_i32 = arith.constant 0 : i32
    %c0_i32_0 = arith.constant 0 : i32
    return %arg0, %c0_i32 : i32, i32
  }
}

</mosaic_0001>

<llo_original>
// kernel: tpu_custom_call.1
$region0: #{tpu_custom_call.1}
  #allocation0 [shape = 'u32[]', space=smem, size = 0x4, offset = 0x4, fixed_abs, tag = 'smem constant byte address 0x4 - core index']
  #allocation1 [shape = 'u32[144,128]{1,0:T(1,128)}', space=vmem, size = 0x12000, scoped, tag = 'internal scratch']
  #allocation2 [shape = 'f32[16,256]{1,0:T(8,128)}', space=vmem, size = 0x4000, scoped, tag = 'scratch operand']
  %s0 = inlined_call_operand.hbm [shape: f32[32,256], index: 0, kind: input, shape index: {}]
  %s1 = inlined_call_operand.hbm [shape: f32[256,256], index: 1, kind: input, shape index: {}]
  %s2 = inlined_call_operand.vmem [shape: f32[1,256], index: 2, kind: input, shape index: {}]
  %s3 = inlined_call_operand.hbm [shape: f32[256,256], index: 3, kind: input, shape index: {}]
  %s4 = inlined_call_operand.vmem [shape: f32[1,256], index: 4, kind: input, shape index: {}]
  %s5 = inlined_call_operand.hbm [shape: f32[32,256], index: 5, kind: output, shape index: {}]
  %s6 = sld [smem:[#allocation0]]
  $region73: #{tpu_custom_call.1} parent=0
    _
  %s8 = ssub.s32 1, %s6
  %s9 = scalar_select 0, %s8, %s6
  $region1: #{tpu_custom_call.1} parent=0
    #allocation3 [shape = 'u8[16384]{0}', space=vmem, size = 0x4000, scoped, tag = 'input window, operand 0']
    #allocation4 [shape = 's32[2]{0}', space=sflag, size = 0x8, scoped, tag = 'scoped memory for tpu_custom_call.1']
    #allocation5 [shape = 's32[2]{0}', space=sflag, size = 0x8, scoped, tag = 'scoped memory for tpu_custom_call.1']
    #allocation6 [shape = 'u8[262144]{0}', space=vmem, size = 0x40000, scoped, tag = 'input window, operand 1']
    #allocation7 [shape = 's32[2]{0}', space=sflag, size = 0x8, scoped, tag = 'scoped memory for tpu_custom_call.1']
    #allocation8 [shape = 'u8[262144]{0}', space=vmem, size = 0x40000, scoped, tag = 'input window, operand 3, single buffered']
    #allocation9 [shape = 'u8[32768]{0}', space=vmem, size = 0x8000, scoped, tag = 'output window, operand 0']
    %10 = vsyncpa [#allocation4], 0
    %s11 = scalar_lea.sflag [#allocation4], 1
    %12 = vsyncpa %s11, 0
    %13 = vsyncpa [#allocation7], 0
    %s14 = scalar_lea.sflag [#allocation7], 1
    %15 = vsyncpa %s14, 0
    %16 = vsyncpa [#allocation5], 0
    %s17 = scalar_lea.sflag [#allocation5], 1
    %18 = vsyncpa %s17, 0
    loop: start=0, step=1, limit=6
    $region2: #{tpu_custom_call.1} parent=1 // loop_pre_header
      _
    $region3: #{tpu_custom_call.1} parent=1 // loop_header
      %s20 = sphi 0, %s24
      %p21 = scmp.ge.s32.totalorder %s20, 6
      %s27 = sphi 0, %s39
      %s28 = sphi 0, %s35
      %s29 = sphi 0, %s27
      %s30 = sphi 0, %s28
      %s31 = sphi 0, %s29
      %s32 = sphi 0, %s30
      %s44 = sphi 0, %s46
      %s47 = sphi 0, %s44
      %s48 = sphi 0, %s47
      %s64 = sphi 0, %s48
      %s70 = sphi 0, %s72
      %s73 = sphi 0, %s70
      %s74 = sphi 0, %s73
      %s90 = sphi 0, %s74
      %s94 = sphi 0, %s94
      %s96 = sphi 0, %s94
      %s97 = sphi 0, %s96
      %s111 = sphi 0, %s97
      %s115 = sphi 0, %s115
      %s117 = sphi 0, %s115
      %s118 = sphi 0, %s117
      %s132 = sphi 0, %s118
      %s136 = sphi 0, %s136
      %s138 = sphi 0, %s136
      %s139 = sphi 0, %s138
      %s153 = sphi 0, %s139
      %s159 = sphi 0, %s161
      %s162 = sphi 0, %s159
      %s163 = sphi 0, %s162
      %s179 = sphi 0, %s163
    $region4: #{tpu_custom_call.1} parent=1 // loop_header_branch
      %23 = sbr.rel (%p21) target = $region8
    $region5: #{tpu_custom_call.1} parent=1 // loop_body
      %s25 = ssub.s32 %s20, 1
      %s26 = ssub.s32 %s20, 2
      %s33 = sadd.s32 1, %s28
      %p34 = scmp.ge.s32.totalorder %s33, 2
      %s35 = scalar_select %p34, 0, %s33
      %s36 = sadd.s32 1, %s27
      %s37 = scalar_select %p34, %s36, %s27
      %p38 = scmp.ge.s32.totalorder %s37, 2
      %s39 = scalar_select %p38, 0, %s37
      %s40 = ssub.s32 %s27, %s39
      %s41 = ssub.s32 %s28, %s35
      %s42 = sor.u32 %s40, %s41
      %p43 = scmp.eq.s32.totalorder %s42, 0
      %s45 = sadd.s32 %s44, 1
      %s46 = scalar_select %p43, %s44, %s45
      %p49 = pneg %p43
      %p50 = scmp.eq.s32.totalorder %s20, 3
      %p51 = por %p49, %p50
      %p52 = scmp.ne.s32.totalorder %s44, %s47
      %p53 = scmp.eq.s32.totalorder %s20, 0
      %p54 = por %p52, %p53
      %p55 = scmp.ne.s32.totalorder %s44, %s47
      %p56 = scmp.eq.s32.totalorder %s25, 3
      %p57 = por %p55, %p56
      %p58 = scmp.ne.s32.totalorder %s47, %s48
      %p59 = scmp.eq.s32.totalorder %s25, 0
      %p60 = por %p58, %p59
      %p61 = scmp.ne.s32.totalorder %s47, %s48
      %p62 = scmp.eq.s32.totalorder %s26, 3
      %p63 = por %p61, %p62
      %p65 = scmp.ne.s32.totalorder %s48, %s64
      %p66 = scmp.eq.s32.totalorder %s26, 0
      %p67 = por %p65, %p66
      %s68 = ssub.s32 %s28, %s35
      %p69 = scmp.eq.s32.totalorder %s68, 0
      %s71 = sadd.s32 %s70, 1
      %s72 = scalar_select %p69, %s70, %s71
      %p75 = pneg %p69
      %p76 = scmp.eq.s32.totalorder %s20, 3
      %p77 = por %p75, %p76
      %p78 = scmp.ne.s32.totalorder %s70, %s73
      %p79 = scmp.eq.s32.totalorder %s20, 0
      %p80 = por %p78, %p79
      %p81 = scmp.ne.s32.totalorder %s70, %s73
      %p82 = scmp.eq.s32.totalorder %s25, 3
      %p83 = por %p81, %p82
      %p84 = scmp.ne.s32.totalorder %s73, %s74
      %p85 = scmp.eq.s32.totalorder %s25, 0
      %p86 = por %p84, %p85
      %p87 = scmp.ne.s32.totalorder %s73, %s74
      %p88 = scmp.eq.s32.totalorder %s26, 3
      %p89 = por %p87, %p88
      %p91 = scmp.ne.s32.totalorder %s74, %s90
      %p92 = scmp.eq.s32.totalorder %s26, 0
      %p93 = por %p91, %p92
      %s95 = sadd.s32 %s94, 1
      %p98 = scmp.eq.s32.totalorder %s20, 3
      %p99 = scmp.ne.s32.totalorder %s94, %s96
      %p100 = scmp.eq.s32.totalorder %s20, 0
      %p101 = por %p99, %p100
      %p102 = scmp.ne.s32.totalorder %s94, %s96
      %p103 = scmp.eq.s32.totalorder %s25, 3
      %p104 = por %p102, %p103
      %p105 = scmp.ne.s32.totalorder %s96, %s97
      %p106 = scmp.eq.s32.totalorder %s25, 0
      %p107 = por %p105, %p106
      %p108 = scmp.ne.s32.totalorder %s96, %s97
      %p109 = scmp.eq.s32.totalorder %s26, 3
      %p110 = por %p108, %p109
      %p112 = scmp.ne.s32.totalorder %s97, %s111
      %p113 = scmp.eq.s32.totalorder %s26, 0
      %p114 = por %p112, %p113
      %s116 = sadd.s32 %s115, 1
      %p119 = scmp.eq.s32.totalorder %s20, 3
      %p120 = scmp.ne.s32.totalorder %s115, %s117
      %p121 = scmp.eq.s32.totalorder %s20, 0
      %p122 = por %p120, %p121
      %p123 = scmp.ne.s32.totalorder %s115, %s117
      %p124 = scmp.eq.s32.totalorder %s25, 3
      %p125 = por %p123, %p124
      %p126 = scmp.ne.s32.totalorder %s117, %s118
      %p127 = scmp.eq.s32.totalorder %s25, 0
      %p128 = por %p126, %p127
      %p129 = scmp.ne.s32.totalorder %s117, %s118
      %p130 = scmp.eq.s32.totalorder %s26, 3
      %p131 = por %p129, %p130
      %p133 = scmp.ne.s32.totalorder %s118, %s132
      %p134 = scmp.eq.s32.totalorder %s26, 0
      %p135 = por %p133, %p134
      %s137 = sadd.s32 %s136, 1
      %p140 = scmp.eq.s32.totalorder %s20, 3
      %p141 = scmp.ne.s32.totalorder %s136, %s138
      %p142 = scmp.eq.s32.totalorder %s20, 0
      %p143 = por %p141, %p142
      %p144 = scmp.ne.s32.totalorder %s136, %s138
      %p145 = scmp.eq.s32.totalorder %s25, 3
      %p146 = por %p144, %p145
      %p147 = scmp.ne.s32.totalorder %s138, %s139
      %p148 = scmp.eq.s32.totalorder %s25, 0
      %p149 = por %p147, %p148
      %p150 = scmp.ne.s32.totalorder %s138, %s139
      %p151 = scmp.eq.s32.totalorder %s26, 3
      %p152 = por %p150, %p151
      %p154 = scmp.ne.s32.totalorder %s139, %s153
      %p155 = scmp.eq.s32.totalorder %s26, 0
      %p156 = por %p154, %p155
      %s157 = ssub.s32 %s27, %s39
      %p158 = scmp.eq.s32.totalorder %s157, 0
      %s160 = sadd.s32 %s159, 1
      %s161 = scalar_select %p158, %s159, %s160
      %p164 = pneg %p158
      %p165 = scmp.eq.s32.totalorder %s20, 3
      %p166 = por %p164, %p165
      %p167 = scmp.ne.s32.totalorder %s159, %s162
      %p168 = scmp.eq.s32.totalorder %s20, 0
      %p169 = por %p167, %p168
      %p170 = scmp.ne.s32.totalorder %s159, %s162
      %p171 = scmp.eq.s32.totalorder %s25, 3
      %p172 = por %p170, %p171
      %p173 = scmp.ne.s32.totalorder %s162, %s163
      %p174 = scmp.eq.s32.totalorder %s25, 0
      %p175 = por %p173, %p174
      %p176 = scmp.ne.s32.totalorder %s162, %s163
      %p177 = scmp.eq.s32.totalorder %s26, 3
      %p178 = por %p176, %p177
      %p180 = scmp.ne.s32.totalorder %s163, %s179
      %p181 = scmp.eq.s32.totalorder %s26, 0
      %p182 = por %p180, %p181
      %p183 = scmp.le.s32.totalorder 1, %s20
      %p184 = scmp.lt.s32.totalorder %s20, 5
      %p185 = pnand %p183, %p184
      %p186 = pneg %p185
      // Predicated region
      $region9: #{tpu_custom_call.1} parent=5 // pred_check
        _
      $region10: #{tpu_custom_call.1} parent=5 // pred_check_branch
        %188 = sbr.rel (%p185) target = $region12
      $region11: #{tpu_custom_call.1} parent=5 // pred_region
        %s189 = ssub.s32 %s20, 1
        // Predicated region
        $region13: #{tpu_custom_call.1} parent=11 // pred_check
          %p190 = pneg %p107
        $region14: #{tpu_custom_call.1} parent=11 // pred_check_branch
          %192 = sbr.rel (%p190) target = $region16
        $region15: #{tpu_custom_call.1} parent=11 // pred_region
          _
        $region16: #{tpu_custom_call.1} parent=11 // pred_fallthru
          _
        // Predicated region
        $region17: #{tpu_custom_call.1} parent=11 // pred_check
          %p193 = pneg %p128
        $region18: #{tpu_custom_call.1} parent=11 // pred_check_branch
          %195 = sbr.rel (%p193) target = $region20
        $region19: #{tpu_custom_call.1} parent=11 // pred_region
          %s197 = ssub.s32 8192, 8192
          %198 = vsyncadd [#allocation7], %s197
          %s199 = sshll.u32 [#allocation8], 4
          %s200 = int_to_ptr.vmem [resolvable:$true] %s199
          %205 = dma.hbm_to_vmem [thread:$0]  %s3, 8192, %s200, [#allocation7], 256, 256, 16
        $region20: #{tpu_custom_call.1} parent=11 // pred_fallthru
          _
        // Predicated region
        $region21: #{tpu_custom_call.1} parent=11 // pred_check
          %p206 = pneg %p149
        $region22: #{tpu_custom_call.1} parent=11 // pred_check_branch
          %208 = sbr.rel (%p206) target = $region24
        $region23: #{tpu_custom_call.1} parent=11 // pred_region
          _
        $region24: #{tpu_custom_call.1} parent=11 // pred_fallthru
          _
      $region12: #{tpu_custom_call.1} parent=5 // pred_fallthru
        _
      %p209 = scmp.lt.s32.totalorder %s20, 4
      // Predicated region
      $region25: #{tpu_custom_call.1} parent=5 // pred_check
        %p210 = pneg %p209
      $region26: #{tpu_custom_call.1} parent=5 // pred_check_branch
        %212 = sbr.rel (%p210) target = $region28
      $region27: #{tpu_custom_call.1} parent=5 // pred_region
        // Predicated region
        $region29: #{tpu_custom_call.1} parent=27 // pred_check
          %p213 = pneg %p54
        $region30: #{tpu_custom_call.1} parent=27 // pred_check_branch
          %215 = sbr.rel (%p213) target = $region32
        $region31: #{tpu_custom_call.1} parent=27 // pred_region
          %s216 = sand.u32 %s44, 1
          %s217 = scalar_lea.sflag [#allocation4], %s216
          %s218 = sand.u32 %s44, 1
          %s219 = smul.addr %s218, 16
          %s220 = scalar_lea.vmem [#allocation3], %s219
          %s221 = smul.u32 2, %s27
          %s223 = ssub.s32 256, 256
          %224 = vsyncadd %s217, %s223
          %s225 = smul.addr %s221, 2
          %s226 = sadd.s32 %s28, %s225
          %s227 = smul.addr %s226, 128
          %s228 = scalar_lea.hbm %s0, %s227
          %s229 = sshll.u32 %s220, 4
          %s230 = int_to_ptr.vmem [resolvable:$true] %s229
          %235 = dma.hbm_to_vmem [thread:$0]  %s228, 256, %s230, %s217, 256, 128, 8
        $region32: #{tpu_custom_call.1} parent=27 // pred_fallthru
          _
        // Predicated region
        $region33: #{tpu_custom_call.1} parent=27 // pred_check
          %p236 = pneg %p80
        $region34: #{tpu_custom_call.1} parent=27 // pred_check_branch
          %238 = sbr.rel (%p236) target = $region36
        $region35: #{tpu_custom_call.1} parent=27 // pred_region
          %s239 = sand.u32 %s20, 1
          %s240 = scalar_lea.sflag [#allocation7], %s239
          %s241 = sand.u32 %s70, 1
          %s242 = smul.addr %s241, 256
          %s243 = scalar_lea.vmem [#allocation6], %s242
          %s244 = smul.u32 16, %s28
          %s246 = ssub.s32 4096, 4096
          %247 = vsyncadd %s240, %s246
          %s248 = smul.addr %s244, 2
          %s249 = smul.addr %s248, 128
          %s250 = scalar_lea.hbm %s1, %s249
          %s251 = sshll.u32 %s243, 4
          %s252 = int_to_ptr.vmem [resolvable:$true] %s251
          %257 = dma.hbm_to_vmem [thread:$0]  %s250, 4096, %s252, %s240, 256, 256, 16
        $region36: #{tpu_custom_call.1} parent=27 // pred_fallthru
          _
      $region28: #{tpu_custom_call.1} parent=5 // pred_fallthru
        _
      %p258 = scmp.le.s32.totalorder 1, %s20
      %p259 = scmp.lt.s32.totalorder %s20, 5
      %p260 = pnand %p258, %p259
      %p261 = pneg %p260
      // Predicated region
      $region37: #{tpu_custom_call.1} parent=5 // pred_check
        _
      $region38: #{tpu_custom_call.1} parent=5 // pred_check_branch
        %263 = sbr.rel (%p260) target = $region40
      $region39: #{tpu_custom_call.1} parent=5 // pred_region
        %s264 = ssub.s32 %s20, 1
        %s265 = sand.u32 %s47, 1
        %s266 = scalar_lea.sflag [#allocation4], %s265
        %s267 = sand.u32 %s47, 1
        %s268 = smul.addr %s267, 16
        %s269 = scalar_lea.vmem [#allocation3], %s268
        // Predicated region
        $region41: #{tpu_custom_call.1} parent=39 // pred_check
          %p270 = pneg %p60
        $region42: #{tpu_custom_call.1} parent=39 // pred_check_branch
          %272 = sbr.rel (%p270) target = $region44
        $region43: #{tpu_custom_call.1} parent=39 // pred_region
          %273 = dma.done %s266, 256
        $region44: #{tpu_custom_call.1} parent=39 // pred_fallthru
          _
        %s274 = sand.u32 %s25, 1
        %s275 = scalar_lea.sflag [#allocation7], %s274
        %s276 = sand.u32 %s73, 1
        %s277 = smul.addr %s276, 256
        %s278 = scalar_lea.vmem [#allocation6], %s277
        // Predicated region
        $region45: #{tpu_custom_call.1} parent=39 // pred_check
          %p279 = pneg %p86
        $region46: #{tpu_custom_call.1} parent=39 // pred_check_branch
          %281 = sbr.rel (%p279) target = $region48
        $region47: #{tpu_custom_call.1} parent=39 // pred_region
          %282 = dma.done %s275, 4096
        $region48: #{tpu_custom_call.1} parent=39 // pred_fallthru
          _
        // Predicated region
        $region49: #{tpu_custom_call.1} parent=39 // pred_check
          %p283 = pneg %p128
        $region50: #{tpu_custom_call.1} parent=39 // pred_check_branch
          %285 = sbr.rel (%p283) target = $region52
        $region51: #{tpu_custom_call.1} parent=39 // pred_region
          %286 = dma.done [#allocation7], 8192
        $region52: #{tpu_custom_call.1} parent=39 // pred_fallthru
          _
        %s287 = sand.u32 %s47, 1
        %s288 = scalar_lea.sflag [#allocation4], %s287
        %s289 = sand.u32 %s47, 1
        %s290 = smul.addr %s289, 16
        %s291 = scalar_lea.vmem [#allocation3], %s290
        %p292 = pneg %p60
        %p293 = pneg %p57
        %s294 = sand.u32 %s25, 1
        %s295 = scalar_lea.sflag [#allocation7], %s294
        %s296 = sand.u32 %s73, 1
        %s297 = smul.addr %s296, 256
        %s298 = scalar_lea.vmem [#allocation6], %s297
        %p299 = pneg %p86
        %p300 = pneg %p83
        %p301 = pneg %p107
        %p302 = pneg %p104
        %p303 = pneg %p128
        %p304 = pneg %p125
        %p305 = pneg %p149
        %p306 = pneg %p146
        %p307 = pneg %p175
        %p308 = pneg %p172
        %s309 = sand.u32 %s162, 1
        %s310 = scalar_lea.sflag [#allocation5], %s309
        %s311 = sand.u32 %s162, 1
        %s312 = smul.addr %s311, 32
        %s313 = scalar_lea.vmem [#allocation9], %s312
        %s314 = smul.u32 2, %s29
        %s315 = smul.u32 16, %s30
        %s316 = smul.u32 2, %s29
        %p317 = scmp.eq.s32.totalorder %s30, 0
        // Predicated region
        $region53: #{tpu_custom_call.1} parent=39 // pred_check
          %p318 = pneg %p317
        $region54: #{tpu_custom_call.1} parent=39 // pred_check_branch
          %320 = sbr.rel (%p318) target = $region56
        $region55: #{tpu_custom_call.1} parent=39 // pred_region
          %v321 = vld [vmem:[%s2] sm:$0x3]
          %v323 = vlaneseq
          %v324 = vshrl.u32 %v323, 7
          %v325 = vsub.s32 0, %v324
          %v326 = vrot.slane %v321, %v325
          %v327 = vlaneseq
          %v328 = vshrl.u32 %v327, 7
          %v329 = vsub.s32 1, %v328
          %v330 = vrot.slane %v321, %v329
          %333 = vst [vmem:[#allocation2] sm:$0xff] %v326
          %334 = vst [vmem:[#allocation2 + $0x8] sm:$0xff] %v330
          %335 = vst [vmem:[#allocation2 + $0x10] sm:$0xff] %v326
          %336 = vst [vmem:[#allocation2 + $0x18] sm:$0xff] %v330
        $region56: #{tpu_custom_call.1} parent=39 // pred_fallthru
          _
        %v337 = vld [vmem:[#allocation2] sm:$0xff]
        %v338 = vld [vmem:[#allocation2 + $0x8] sm:$0xff]
        %v339 = vld [vmem:[#allocation2 + $0x10] sm:$0xff]
        %v340 = vld [vmem:[#allocation2 + $0x18] sm:$0xff]
        %v341 = vld [vmem:[%s269] sm:$0xff]
        %v342 = vld [vmem:[%s269 + $0x8] sm:$0xff]
        %v343 = vld [vmem:[%s278] sm:$0xff]
        %v344 = vld [vmem:[%s278 + $0x8] sm:$0xff]
        %v345 = vld [vmem:[%s278 + $0x10] sm:$0xff]
        %v346 = vld [vmem:[%s278 + $0x18] sm:$0xff]
        %v347 = vld [vmem:[%s278 + $0x20] sm:$0xff]
        %v348 = vld [vmem:[%s278 + $0x28] sm:$0xff]
        %v349 = vld [vmem:[%s278 + $0x30] sm:$0xff]
        %v350 = vld [vmem:[%s278 + $0x38] sm:$0xff]
        %v351 = vld [vmem:[%s278 + $0x40] sm:$0xff]
        %v352 = vld [vmem:[%s278 + $0x48] sm:$0xff]
        %v353 = vld [vmem:[%s278 + $0x50] sm:$0xff]
        %v354 = vld [vmem:[%s278 + $0x58] sm:$0xff]
        %v355 = vld [vmem:[%s278 + $0x60] sm:$0xff]
        %v356 = vld [vmem:[%s278 + $0x68] sm:$0xff]
        %v357 = vld [vmem:[%s278 + $0x70] sm:$0xff]
        %v358 = vld [vmem:[%s278 + $0x78] sm:$0xff]
        %v359 = vld [vmem:[%s278 + $0x80] sm:$0xff]
        %v360 = vld [vmem:[%s278 + $0x88] sm:$0xff]
        %v361 = vld [vmem:[%s278 + $0x90] sm:$0xff]
        %v362 = vld [vmem:[%s278 + $0x98] sm:$0xff]
        %v363 = vld [vmem:[%s278 + $0xa0] sm:$0xff]
        %v364 = vld [vmem:[%s278 + $0xa8] sm:$0xff]
        %v365 = vld [vmem:[%s278 + $0xb0] sm:$0xff]
        %v366 = vld [vmem:[%s278 + $0xb8] sm:$0xff]
        %v367 = vld [vmem:[%s278 + $0xc0] sm:$0xff]
        %v368 = vld [vmem:[%s278 + $0xc8] sm:$0xff]
        %v369 = vld [vmem:[%s278 + $0xd0] sm:$0xff]
        %v370 = vld [vmem:[%s278 + $0xd8] sm:$0xff]
        %v371 = vld [vmem:[%s278 + $0xe0] sm:$0xff]
        %v372 = vld [vmem:[%s278 + $0xe8] sm:$0xff]
        %v373 = vld [vmem:[%s278 + $0xf0] sm:$0xff]
        %v374 = vld [vmem:[%s278 + $0xf8] sm:$0xff]
        %375 = vmatprep.subr.mxu0 %v344
        %376 = vmatpush1.msra.mxu0 %v343
        %377 = vmatprep.subr.mxu0 %v346
        %378 = vmatpush1.msra.mxu0 %v345
        %379 = vmatprep.subr.mxu0 %v348
        %380 = vmatpush1.msra.mxu0 %v347
        %381 = vmatprep.subr.mxu0 %v350
        %382 = vmatpush1.msra.mxu0 %v349
        %383 = vmatprep.subr.mxu0 %v352
        %384 = vmatpush1.msra.mxu0 %v351
        %385 = vmatprep.subr.mxu0 %v354
        %386 = vmatpush1.msra.mxu0 %v353
        %387 = vmatprep.subr.mxu0 %v356
        %388 = vmatpush1.msra.mxu0 %v355
        %389 = vmatprep.subr.mxu0 %v358
        %390 = vmatpush1.msra.mxu0 %v357
        %391 = vmatprep.subr.mxu0 %v360
        %392 = vmatpush1.msra.mxu0 %v359
        %393 = vmatprep.subr.mxu0 %v362
        %394 = vmatpush1.msra.mxu0 %v361
        %395 = vmatprep.subr.mxu0 %v364
        %396 = vmatpush1.msra.mxu0 %v363
        %397 = vmatprep.subr.mxu0 %v366
        %398 = vmatpush1.msra.mxu0 %v365
        %399 = vmatprep.subr.mxu0 %v368
        %400 = vmatpush1.msra.mxu0 %v367
        %401 = vmatprep.subr.mxu0 %v370
        %402 = vmatpush1.msra.mxu0 %v369
        %403 = vmatprep.subr.mxu0 %v372
        %404 = vmatpush1.msra.mxu0 %v371
        %405 = vmatprep.subr.mxu0 %v374
        %406 = vmatpush1.msra.mxu0 %v373
        %407 = vmatprep.subr.mxu0 0.0
        %408 = vmatpush1.msra.mxu0 0.0
        %409 = vmatprep.subr.mxu0 0.0
        %410 = vmatpush1.msra.mxu0 0.0
        %411 = vmatprep.subr.mxu0 0.0
        %412 = vmatpush1.msra.mxu0 0.0
        %413 = vmatprep.subr.mxu0 0.0
        %414 = vmatpush1.msra.mxu0 0.0
        %415 = vmatprep.subr.mxu0 0.0
        %416 = vmatpush1.msra.mxu0 0.0
        %417 = vmatprep.subr.mxu0 0.0
        %418 = vmatpush1.msra.mxu0 0.0
        %419 = vmatprep.subr.mxu0 0.0
        %420 = vmatpush1.msra.mxu0 0.0
        %421 = vmatprep.subr.mxu0 0.0
        %422 = vmatpush1.msra.mxu0 0.0
        %423 = vmatprep.subr.mxu0 0.0
        %424 = vmatpush1.msra.mxu0 0.0
        %425 = vmatprep.subr.mxu0 0.0
        %426 = vmatpush1.msra.mxu0 0.0
        %427 = vmatprep.subr.mxu0 0.0
        %428 = vmatpush1.msra.mxu0 0.0
        %429 = vmatprep.subr.mxu0 0.0
        %430 = vmatpush1.msra.mxu0 0.0
        %431 = vmatprep.subr.mxu0 0.0
        %432 = vmatpush1.msra.mxu0 0.0
        %433 = vmatprep.subr.mxu0 0.0
        %434 = vmatpush1.msra.mxu0 0.0
        %435 = vmatprep.subr.mxu0 0.0
        %436 = vmatpush1.msra.mxu0 0.0
        %437 = vmatprep.subr.mxu0 0.0
        %438 = vmatpush1.msra.mxu0 0.0
        %439 = vmatprep.mubr.f32.mxu0 0.0
        %440 = vmatmul.mubr.f32.gmra.mrb[0].mxu0 %v341
        %v441 = vpop.f32.mrb[0].mxu0
        %v442 = vadd.f32 0.0, %v441
        %v443 = vpop.f32.mrb[0].mxu0
        %v444 = vadd.f32 0.0, %v443
        %445 = vmatprep.mubr.f32.mxu0 0.0
        %446 = vmatmul.mubr.f32.gmra.mrb[0].mxu0 %v342
        %v447 = vpop.f32.mrb[0].mxu0
        %v448 = vadd.f32 0.0, %v447
        %v449 = vpop.f32.mrb[0].mxu0
        %v450 = vadd.f32 0.0, %v449
        %451 = vdwg.mxu0
        %v452 = vadd.f32 %v337, %v442
        %v453 = vadd.f32 %v338, %v444
        %v454 = vadd.f32 %v339, %v448
        %v455 = vadd.f32 %v340, %v450
        %456 = vst [vmem:[#allocation2] sm:$0xff] %v452
        %457 = vst [vmem:[#allocation2 + $0x8] sm:$0xff] %v453
        %458 = vst [vmem:[#allocation2 + $0x10] sm:$0xff] %v454
        %459 = vst [vmem:[#allocation2 + $0x18] sm:$0xff] %v455
        %p460 = scmp.eq.s32.totalorder %s30, 1
        // Predicated region
        $region57: #{tpu_custom_call.1} parent=39 // pred_check
          %p461 = pneg %p460
        $region58: #{tpu_custom_call.1} parent=39 // pred_check_branch
          %463 = sbr.rel (%p461) target = $region60
        $region59: #{tpu_custom_call.1} parent=39 // pred_region
          %v464 = vld [vmem:[#allocation2] sm:$0xff]
          %v465 = vld [vmem:[#allocation2 + $0x8] sm:$0xff]
          %v466 = vld [vmem:[#allocation2 + $0x10] sm:$0xff]
          %v467 = vld [vmem:[#allocation2 + $0x18] sm:$0xff]
          %v468 = vld [vmem:[#allocation8] sm:$0xff]
          %v469 = vld [vmem:[#allocation8 + $0x8] sm:$0xff]
          %v470 = vld [vmem:[#allocation8 + $0x10] sm:$0xff]
          %v471 = vld [vmem:[#allocation8 + $0x18] sm:$0xff]
          %v472 = vld [vmem:[#allocation8 + $0x20] sm:$0xff]
          %v473 = vld [vmem:[#allocation8 + $0x28] sm:$0xff]
          %v474 = vld [vmem:[#allocation8 + $0x30] sm:$0xff]
          %v475 = vld [vmem:[#allocation8 + $0x38] sm:$0xff]
          %v476 = vld [vmem:[#allocation8 + $0x40] sm:$0xff]
          %v477 = vld [vmem:[#allocation8 + $0x48] sm:$0xff]
          %v478 = vld [vmem:[#allocation8 + $0x50] sm:$0xff]
          %v479 = vld [vmem:[#allocation8 + $0x58] sm:$0xff]
          %v480 = vld [vmem:[#allocation8 + $0x60] sm:$0xff]
          %v481 = vld [vmem:[#allocation8 + $0x68] sm:$0xff]
          %v482 = vld [vmem:[#allocation8 + $0x70] sm:$0xff]
          %v483 = vld [vmem:[#allocation8 + $0x78] sm:$0xff]
          %v484 = vld [vmem:[#allocation8 + $0x80] sm:$0xff]
          %v485 = vld [vmem:[#allocation8 + $0x88] sm:$0xff]
          %v486 = vld [vmem:[#allocation8 + $0x90] sm:$0xff]
          %v487 = vld [vmem:[#allocation8 + $0x98] sm:$0xff]
          %v488 = vld [vmem:[#allocation8 + $0xa0] sm:$0xff]
          %v489 = vld [vmem:[#allocation8 + $0xa8] sm:$0xff]
          %v490 = vld [vmem:[#allocation8 + $0xb0] sm:$0xff]
          %v491 = vld [vmem:[#allocation8 + $0xb8] sm:$0xff]
          %v492 = vld [vmem:[#allocation8 + $0xc0] sm:$0xff]
          %v493 = vld [vmem:[#allocation8 + $0xc8] sm:$0xff]
          %v494 = vld [vmem:[#allocation8 + $0xd0] sm:$0xff]
          %v495 = vld [vmem:[#allocation8 + $0xd8] sm:$0xff]
          %v496 = vld [vmem:[#allocation8 + $0xe0] sm:$0xff]
          %v497 = vld [vmem:[#allocation8 + $0xe8] sm:$0xff]
          %v498 = vld [vmem:[#allocation8 + $0xf0] sm:$0xff]
          %v499 = vld [vmem:[#allocation8 + $0xf8] sm:$0xff]
          %v500 = vld [vmem:[#allocation8 + $0x100] sm:$0xff]
          %v501 = vld [vmem:[#allocation8 + $0x108] sm:$0xff]
          %v502 = vld [vmem:[#allocation8 + $0x110] sm:$0xff]
          %v503 = vld [vmem:[#allocation8 + $0x118] sm:$0xff]
          %v504 = vld [vmem:[#allocation8 + $0x120] sm:$0xff]
          %v505 = vld [vmem:[#allocation8 + $0x128] sm:$0xff]
          %v506 = vld [vmem:[#allocation8 + $0x130] sm:$0xff]
          %v507 = vld [vmem:[#allocation8 + $0x138] sm:$0xff]
          %v508 = vld [vmem:[#allocation8 + $0x140] sm:$0xff]
          %v509 = vld [vmem:[#allocation8 + $0x148] sm:$0xff]
          %v510 = vld [vmem:[#allocation8 + $0x150] sm:$0xff]
          %v511 = vld [vmem:[#allocation8 + $0x158] sm:$0xff]
          %v512 = vld [vmem:[#allocation8 + $0x160] sm:$0xff]
          %v513 = vld [vmem:[#allocation8 + $0x168] sm:$0xff]
          %v514 = vld [vmem:[#allocation8 + $0x170] sm:$0xff]
          %v515 = vld [vmem:[#allocation8 + $0x178] sm:$0xff]
          %v516 = vld [vmem:[#allocation8 + $0x180] sm:$0xff]
          %v517 = vld [vmem:[#allocation8 + $0x188] sm:$0xff]
          %v518 = vld [vmem:[#allocation8 + $0x190] sm:$0xff]
          %v519 = vld [vmem:[#allocation8 + $0x198] sm:$0xff]
          %v520 = vld [vmem:[#allocation8 + $0x1a0] sm:$0xff]
          %v521 = vld [vmem:[#allocation8 + $0x1a8] sm:$0xff]
          %v522 = vld [vmem:[#allocation8 + $0x1b0] sm:$0xff]
          %v523 = vld [vmem:[#allocation8 + $0x1b8] sm:$0xff]
          %v524 = vld [vmem:[#allocation8 + $0x1c0] sm:$0xff]
          %v525 = vld [vmem:[#allocation8 + $0x1c8] sm:$0xff]
          %v526 = vld [vmem:[#allocation8 + $0x1d0] sm:$0xff]
          %v527 = vld [vmem:[#allocation8 + $0x1d8] sm:$0xff]
          %v528 = vld [vmem:[#allocation8 + $0x1e0] sm:$0xff]
          %v529 = vld [vmem:[#allocation8 + $0x1e8] sm:$0xff]
          %v530 = vld [vmem:[#allocation8 + $0x1f0] sm:$0xff]
          %v531 = vld [vmem:[#allocation8 + $0x1f8] sm:$0xff]
          %v532 = vld [vmem:[%s4] sm:$0x3]
          %v534 = vlaneseq
          %v535 = vshrl.u32 %v534, 7
          %v536 = vsub.s32 0, %v535
          %v537 = vrot.slane %v532, %v536
          %v538 = vlaneseq
          %v539 = vshrl.u32 %v538, 7
          %v540 = vsub.s32 1, %v539
          %v541 = vrot.slane %v532, %v540
          %544 = vmatprep.subr.mxu0 %v469
          %545 = vmatpush1.msra.mxu0 %v468
          %546 = vmatprep.subr.mxu0 %v471
          %547 = vmatpush1.msra.mxu0 %v470
          %548 = vmatprep.subr.mxu0 %v473
          %549 = vmatpush1.msra.mxu0 %v472
          %550 = vmatprep.subr.mxu0 %v475
          %551 = vmatpush1.msra.mxu0 %v474
          %552 = vmatprep.subr.mxu0 %v477
          %553 = vmatpush1.msra.mxu0 %v476
          %554 = vmatprep.subr.mxu0 %v479
          %555 = vmatpush1.msra.mxu0 %v478
          %556 = vmatprep.subr.mxu0 %v481
          %557 = vmatpush1.msra.mxu0 %v480
          %558 = vmatprep.subr.mxu0 %v483
          %559 = vmatpush1.msra.mxu0 %v482
          %560 = vmatprep.subr.mxu0 %v485
          %561 = vmatpush1.msra.mxu0 %v484
          %562 = vmatprep.subr.mxu0 %v487
          %563 = vmatpush1.msra.mxu0 %v486
          %564 = vmatprep.subr.mxu0 %v489
          %565 = vmatpush1.msra.mxu0 %v488
          %566 = vmatprep.subr.mxu0 %v491
          %567 = vmatpush1.msra.mxu0 %v490
          %568 = vmatprep.subr.mxu0 %v493
          %569 = vmatpush1.msra.mxu0 %v492
          %570 = vmatprep.subr.mxu0 %v495
          %571 = vmatpush1.msra.mxu0 %v494
          %572 = vmatprep.subr.mxu0 %v497
          %573 = vmatpush1.msra.mxu0 %v496
          %574 = vmatprep.subr.mxu0 %v499
          %575 = vmatpush1.msra.mxu0 %v498
          %576 = vmatprep.subr.mxu0 %v501
          %577 = vmatpush1.msra.mxu0 %v500
          %578 = vmatprep.subr.mxu0 %v503
          %579 = vmatpush1.msra.mxu0 %v502
          %580 = vmatprep.subr.mxu0 %v505
          %581 = vmatpush1.msra.mxu0 %v504
          %582 = vmatprep.subr.mxu0 %v507
          %583 = vmatpush1.msra.mxu0 %v506
          %584 = vmatprep.subr.mxu0 %v509
          %585 = vmatpush1.msra.mxu0 %v508
          %586 = vmatprep.subr.mxu0 %v511
          %587 = vmatpush1.msra.mxu0 %v510
          %588 = vmatprep.subr.mxu0 %v513
          %589 = vmatpush1.msra.mxu0 %v512
          %590 = vmatprep.subr.mxu0 %v515
          %591 = vmatpush1.msra.mxu0 %v514
          %592 = vmatprep.subr.mxu0 %v517
          %593 = vmatpush1.msra.mxu0 %v516
          %594 = vmatprep.subr.mxu0 %v519
          %595 = vmatpush1.msra.mxu0 %v518
          %596 = vmatprep.subr.mxu0 %v521
          %597 = vmatpush1.msra.mxu0 %v520
          %598 = vmatprep.subr.mxu0 %v523
          %599 = vmatpush1.msra.mxu0 %v522
          %600 = vmatprep.subr.mxu0 %v525
          %601 = vmatpush1.msra.mxu0 %v524
          %602 = vmatprep.subr.mxu0 %v527
          %603 = vmatpush1.msra.mxu0 %v526
          %604 = vmatprep.subr.mxu0 %v529
          %605 = vmatpush1.msra.mxu0 %v528
          %606 = vmatprep.subr.mxu0 %v531
          %607 = vmatpush1.msra.mxu0 %v530
          %608 = vmatprep.mubr.f32.mxu0 %v465
          %609 = vmatmul.mubr.f32.gmra.mrb[0].mxu0 %v464
          %v610 = vpop.f32.mrb[0].mxu0
          %v611 = vadd.f32 %v537, %v610
          %v612 = vpop.f32.mrb[0].mxu0
          %v613 = vadd.f32 %v541, %v612
          %614 = vmatprep.mubr.f32.mxu0 %v467
          %615 = vmatmul.mubr.f32.gmra.mrb[0].mxu0 %v466
          %v616 = vpop.f32.mrb[0].mxu0
          %v617 = vadd.f32 %v537, %v616
          %v618 = vpop.f32.mrb[0].mxu0
          %v619 = vadd.f32 %v541, %v618
          %620 = vdwg.mxu0
          %v621 = vxor.u32 %v611, 2147483648
          %v622 = vxor.u32 %v613, 2147483648
          %v623 = vxor.u32 %v617, 2147483648
          %v624 = vxor.u32 %v619, 2147483648
          %v625 = vmul.f32 %v621, 1.442695
          %v626 = vpow.pop %v625
          %v627 = vmul.f32 %v622, 1.442695
          %v628 = vpow.pop %v627
          %v629 = vmul.f32 %v623, 1.442695
          %v630 = vpow.pop %v629
          %v631 = vmul.f32 %v624, 1.442695
          %v632 = vpow.pop %v631
          %v633 = vadd.f32 %v626, 1.0
          %v634 = vadd.f32 %v628, 1.0
          %v635 = vadd.f32 %v630, 1.0
          %v636 = vadd.f32 %v632, 1.0
          %v637 = vrcp.pop %v633
          %v638 = vmul.f32 1.0, %v637
          %v639 = vrcp.pop %v634
          %v640 = vmul.f32 1.0, %v639
          %v641 = vrcp.pop %v635
          %v642 = vmul.f32 1.0, %v641
          %v643 = vrcp.pop %v636
          %v644 = vmul.f32 1.0, %v643
          %v645 = vmul.f32 %v464, %v638
          %v646 = vmul.f32 %v465, %v640
          %v647 = vmul.f32 %v466, %v642
          %v648 = vmul.f32 %v467, %v644
          %649 = vst [vmem:[%s313] sm:$0xff] %v645
          %650 = vst [vmem:[%s313 + $0x8] sm:$0xff] %v646
          %651 = vst [vmem:[%s313 + $0x10] sm:$0xff] %v647
          %652 = vst [vmem:[%s313 + $0x18] sm:$0xff] %v648
        $region60: #{tpu_custom_call.1} parent=39 // pred_fallthru
          _
        %s653 = sand.u32 %s162, 1
        %s654 = scalar_lea.sflag [#allocation5], %s653
        %s655 = sand.u32 %s162, 1
        %s656 = smul.addr %s655, 32
        %s657 = scalar_lea.vmem [#allocation9], %s656
        // Predicated region
        $region61: #{tpu_custom_call.1} parent=39 // pred_check
          %p658 = pneg %p172
        $region62: #{tpu_custom_call.1} parent=39 // pred_check_branch
          %660 = sbr.rel (%p658) target = $region64
        $region63: #{tpu_custom_call.1} parent=39 // pred_region
          %s661 = smul.u32 2, %s29
          %s663 = ssub.s32 512, 512
          %664 = vsyncadd %s654, %s663
          %s665 = smul.addr %s661, 2
          %s666 = smul.addr %s665, 128
          %s667 = scalar_lea.hbm %s5, %s666
          %s668 = sshll.u32 %s657, 4
          %s669 = int_to_ptr.vmem [resolvable:$true] %s668
          %674 = dma.vmem_to_hbm [thread:$0]  %s669, 512, %s667, %s654, 256, 256, 16
        $region64: #{tpu_custom_call.1} parent=39 // pred_fallthru
          _
      $region40: #{tpu_custom_call.1} parent=5 // pred_fallthru
        _
      %p675 = scmp.le.s32.totalorder 2, %s20
      // Predicated region
      $region65: #{tpu_custom_call.1} parent=5 // pred_check
        %p676 = pneg %p675
      $region66: #{tpu_custom_call.1} parent=5 // pred_check_branch
        %678 = sbr.rel (%p676) target = $region68
      $region67: #{tpu_custom_call.1} parent=5 // pred_region
        %s679 = ssub.s32 %s20, 2
        // Predicated region
        $region69: #{tpu_custom_call.1} parent=67 // pred_check
          %p680 = pneg %p178
        $region70: #{tpu_custom_call.1} parent=67 // pred_check_branch
          %682 = sbr.rel (%p680) target = $region72
        $region71: #{tpu_custom_call.1} parent=67 // pred_region
          %s683 = sand.u32 %s163, 1
          %s684 = scalar_lea.sflag [#allocation5], %s683
          %s685 = sand.u32 %s163, 1
          %s686 = smul.addr %s685, 32
          %s687 = scalar_lea.vmem [#allocation9], %s686
          %688 = dma.done %s684, 512
        $region72: #{tpu_custom_call.1} parent=67 // pred_fallthru
          _
      $region68: #{tpu_custom_call.1} parent=5 // pred_fallthru
        _
    $region6: #{tpu_custom_call.1} parent=1 // loop_footer
      %s24 = sadd.s32 1, %s20
    $region7: #{tpu_custom_call.1} parent=1 // loop_footer_branch
      %19 = sbr.rel target = $region3
    $region8: #{tpu_custom_call.1} parent=1 // loop_exit
      _
    %689 = vsyncpa [#allocation4], 1
    %s690 = scalar_lea.sflag [#allocation4], 1
    %691 = vsyncpa %s690, 1
    %692 = vsyncpa [#allocation7], 1
    %s693 = scalar_lea.sflag [#allocation7], 1
    %694 = vsyncpa %s693, 1
    %695 = vsyncpa [#allocation5], 1
    %s696 = scalar_lea.sflag [#allocation5], 1
    %697 = vsyncpa %s696, 1

</llo_original>
